<compile_context>
chip_gen: v5e
topology: v5e:2x2
jax: 0.10.0
libtpu: 0.0.40
codegen_flags: <defaults>
</compile_context>

<pallas_src>
import functools

import jax
import jax.numpy as jnp
from jax.experimental import pallas as pl
from jax.experimental.pallas import tpu as pltpu


_NEG = -1e30  # large-negative finite sentinel (avoids inf-inf NaN hazards)


def _cosface_kernel(sim_ref, label_ref, loss_ref, m_sc, l_sc, t_sc,
                    *, s, margin, num_classes):
    j = pl.program_id(1)  # C (reduction) axis, innermost

    @pl.when(j == 0)
    def _():
        m_sc[...] = jnp.full_like(m_sc, _NEG)
        l_sc[...] = jnp.zeros_like(l_sc)
        t_sc[...] = jnp.zeros_like(t_sc)

    # Cast after the (possibly bf16) load; clamp_min(0) as in the reference.
    sim = jnp.maximum(sim_ref[...].astype(jnp.float32), 0.0)
    labels = label_ref[...]                                     # (Bt, 1) int32
    bt, ct = sim.shape

    c0 = j * ct
    class_ids = c0 + jax.lax.broadcasted_iota(jnp.int32, (bt, ct), 1)
    target = class_ids == labels                                # boolean one-hot
    valid = class_ids < num_classes                             # mask padded lanes

    # logits = s * (sim - one_hot * m), without materializing a float one_hot.
    logits = jnp.where(target, s * (sim - margin), s * sim)
    logits = jnp.where(valid, logits, _NEG)

    # Online (streaming) logsumexp across the C grid axis.
    m_prev = m_sc[...]
    m_new = jnp.maximum(m_prev, jnp.max(logits, axis=-1, keepdims=True))
    alpha = jnp.exp(m_prev - m_new)
    p = jnp.exp(logits - m_new)
    l_sc[...] = alpha * l_sc[...] + jnp.sum(p, axis=-1, keepdims=True)
    m_sc[...] = m_new
    # The target class lives in exactly one C tile -> accumulate its logit.
    t_sc[...] += jnp.sum(jnp.where(target, logits, 0.0), axis=-1, keepdims=True)

    @pl.when(j == pl.num_programs(1) - 1)
    def _():
        lse = m_sc[...] + jnp.log(l_sc[...])
        loss_ref[...] = lse - t_sc[...]                         # per-example CE


def cosface_loss(similarity, fn, wn, uc, label, *, s=30.0, m=0.3,
                 b_tile=None, c_tile=None):
    """Pallas CosFaceLoss.forward. fn / wn / uc are unused by the reference."""
    del fn, wn, uc
    B, C = similarity.shape
    label_2d = label.astype(jnp.int32).reshape(B, 1)
    itemsize = jnp.dtype(similarity.dtype).itemsize

    # Tile selection: use the full dim when small (always a legal block shape),
    # otherwise an (8,128)-aligned cap that keeps double-buffered tiles well
    # within every generation's VMEM (incl. v7x's 64 MiB).
    if b_tile is None:
        b_tile = B if B <= 256 else 256
    if c_tile is None:
        c_tile = C if C <= 4096 else 4096

    grid = (pl.cdiv(B, b_tile), pl.cdiv(C, c_tile))

    kernel = functools.partial(_cosface_kernel, s=float(s), margin=float(m),
                               num_classes=C)

    # Double-buffered sim tile + labels + output + scratch, with headroom,
    # clamped so it is safe on v5e/v6e (128 MiB) and v7x (64 MiB) alike.
    need = 2 * b_tile * c_tile * itemsize + 2 * b_tile * 4 + 4 * b_tile * 4
    vmem_limit = int(min(max(2 * need, 32 << 20), 48 << 20))

    grid_spec = pltpu.PrefetchScalarGridSpec(
        num_scalar_prefetch=0,
        grid=grid,
        in_specs=[
            # similarity read in native dtype; tiled over (B, C).
            pl.BlockSpec((b_tile, c_tile), lambda i, j: (i, j)),
            # labels: index_map invariant in j -> fetched once per B tile.
            pl.BlockSpec((b_tile, 1), lambda i, j: (i, 0)),
        ],
        # Per-example losses stay resident in VMEM across the C axis.
        out_specs=pl.BlockSpec((b_tile, 1), lambda i, j: (i, 0)),
        scratch_shapes=[
            pltpu.VMEM((b_tile, 1), jnp.float32),   # running max
            pltpu.VMEM((b_tile, 1), jnp.float32),   # running sum(exp)
            pltpu.VMEM((b_tile, 1), jnp.float32),   # target logit
        ],
    )

    per_example = pl.pallas_call(
        kernel,
        out_shape=jax.ShapeDtypeStruct((B, 1), jnp.float32),
        grid_spec=grid_spec,
        compiler_params=pltpu.CompilerParams(
            dimension_semantics=("parallel", "arbitrary"),
            vmem_limit_bytes=vmem_limit,
        ),
        cost_estimate=pl.CostEstimate(
            flops=6 * B * C,
            transcendentals=B * C,
            bytes_accessed=B * C * itemsize + B * 4 + B * 4,
        ),
    )(similarity, label_2d)

    # Final mean over the batch is a trivial wrapper-side reduction.
    return jnp.mean(per_example)


if __name__ == "__main__":
    key = jax.random.PRNGKey(0)
    k_sim, k_lab, k_fn, k_wn, k_uc, k_sim2, k_lab2 = jax.random.split(key, 7)

    def reference(similarity, label, s=30.0, m=0.3):
        sim = jnp.maximum(similarity.astype(jnp.float32), 0.0)
        one_hot = jax.nn.one_hot(label, similarity.shape[1], dtype=jnp.float32)
        logits = s * (sim - one_hot * m)
        return jnp.mean(jax.nn.logsumexp(logits, axis=-1)
                        - jnp.sum(logits * one_hot, axis=-1))

    # Case 1: small shapes, single block.
    B, C = 8, 32
    similarity = jax.random.normal(k_sim, (B, C), dtype=jnp.float32)
    label = jax.random.randint(k_lab, (B,), 0, C, dtype=jnp.int32)
    fn = jax.random.normal(k_fn, (B,), dtype=jnp.float32)
    wn = jax.random.normal(k_wn, (C,), dtype=jnp.float32)
    uc = jax.random.normal(k_uc, (B,), dtype=jnp.float32)

    loss = cosface_loss(similarity, fn, wn, uc, label, s=30.0, m=0.3)
    jax.block_until_ready(loss)
    ref = reference(similarity, label)
    assert jnp.allclose(loss, ref, atol=1e-5, rtol=1e-5), (loss, ref)

    # Case 2: bf16 input, non-divisible shapes, forced small tiles to exercise
    # the online-logsumexp C reduction and the lane / row padding masks.
    B2, C2 = 12, 300
    sim2 = jax.random.normal(k_sim2, (B2, C2), dtype=jnp.bfloat16)
    lab2 = jax.random.randint(k_lab2, (B2,), 0, C2, dtype=jnp.int32)
    loss2 = cosface_loss(sim2, None, None, None, lab2, s=30.0, m=0.3,
                         b_tile=8, c_tile=128)
    jax.block_until_ready(loss2)
    ref2 = reference(sim2, lab2)
    assert jnp.allclose(loss2, ref2, atol=2e-3, rtol=2e-3), (loss2, ref2)

    print("KERNEL_OK")
</pallas_src>

<mosaic_0001>
module attributes {stable_mosaic.version = 11 : i64} {
  func.func @_cosface_kernel(%arg0: i32, %arg1: i32, %arg2: memref<8x32xf32, #tpu.memory_space<vmem>>, %arg3: memref<8x1xi32, #tpu.memory_space<vmem>>, %arg4: memref<8x1xf32, #tpu.memory_space<vmem>>, %arg5: memref<8x1xf32, #tpu.memory_space<vmem>>, %arg6: memref<8x1xf32, #tpu.memory_space<vmem>>, %arg7: memref<8x1xf32, #tpu.memory_space<vmem>>) attributes {dimension_semantics = [#tpu.dimension_semantics<parallel>, #tpu.dimension_semantics<arbitrary>], iteration_bounds = array<i64: 1, 1>, scalar_prefetch = 0 : i64, scratch_operands = 3 : i64, tpu.core_type = #tpu.core_type<tc>, window_params = [{transform_indices = @transform_0, window_bounds = array<i64: 8, 32>}, {transform_indices = @transform_1, window_bounds = array<i64: 8, 1>}, {transform_indices = @transform_2, window_bounds = array<i64: 8, 1>}]} {
    %c0_i32 = arith.constant 0 : i32
    %0 = arith.cmpi eq, %arg1, %c0_i32 : i32
    %1 = arith.extui %0 : i1 to i32
    %c0_i32_0 = arith.constant 0 : i32
    %2 = arith.cmpi ne, %1, %c0_i32_0 : i32
    scf.if %2 {
      %cst_27 = arith.constant -1.000000e+30 : f32
      %50 = vector.broadcast %cst_27 : f32 to vector<8x1xf32>
      %c0_28 = arith.constant 0 : index
      %c0_29 = arith.constant 0 : index
      %51 = vector.load %arg5[%c0_28, %c0_29] : memref<8x1xf32, #tpu.memory_space<vmem>>, vector<8x1xf32>
      tpu.vector_store %arg5[%c0_28, %c0_29], %50 {strides = array<i32>} : memref<8x1xf32, #tpu.memory_space<vmem>>, vector<8x1xf32>,
      %cst_30 = arith.constant 0.000000e+00 : f32
      %52 = vector.broadcast %cst_30 : f32 to vector<8x1xf32>
      %c0_31 = arith.constant 0 : index
      %c0_32 = arith.constant 0 : index
      %53 = vector.load %arg6[%c0_31, %c0_32] : memref<8x1xf32, #tpu.memory_space<vmem>>, vector<8x1xf32>
      tpu.vector_store %arg6[%c0_31, %c0_32], %52 {strides = array<i32>} : memref<8x1xf32, #tpu.memory_space<vmem>>, vector<8x1xf32>,
      %cst_33 = arith.constant 0.000000e+00 : f32
      %54 = vector.broadcast %cst_33 : f32 to vector<8x1xf32>
      %c0_34 = arith.constant 0 : index
      %c0_35 = arith.constant 0 : index
      %55 = vector.load %arg7[%c0_34, %c0_35] : memref<8x1xf32, #tpu.memory_space<vmem>>, vector<8x1xf32>
      tpu.vector_store %arg7[%c0_34, %c0_35], %54 {strides = array<i32>} : memref<8x1xf32, #tpu.memory_space<vmem>>, vector<8x1xf32>,
    } else {
    }
    %c0 = arith.constant 0 : index
    %c0_1 = arith.constant 0 : index
    %3 = vector.load %arg2[%c0, %c0_1] : memref<8x32xf32, #tpu.memory_space<vmem>>, vector<8x32xf32>
    %cst = arith.constant 0.000000e+00 : f32
    %4 = vector.broadcast %cst : f32 to vector<8x32xf32>
    %5 = arith.maximumf %3, %4 : vector<8x32xf32>
    %c0_2 = arith.constant 0 : index
    %c0_3 = arith.constant 0 : index
    %6 = vector.load %arg3[%c0_2, %c0_3] : memref<8x1xi32, #tpu.memory_space<vmem>>, vector<8x1xi32>
    %c32_i32 = arith.constant 32 : i32
    %7 = arith.muli %arg1, %c32_i32 : i32
    %8 = tpu.iota {dimensions = array<i32: 1>} : vector<8x32xi32>
    %9 = vector.broadcast %7 : i32 to vector<8x32xi32>
    %10 = arith.addi %9, %8 : vector<8x32xi32>
    %11 = vector.broadcast %6 : vector<8x1xi32> to vector<8x32xi32>
    %12 = arith.cmpi eq, %10, %11 : vector<8x32xi32>
    %c32_i32_4 = arith.constant 32 : i32
    %13 = vector.broadcast %c32_i32_4 : i32 to vector<8x32xi32>
    %14 = arith.cmpi slt, %10, %13 : vector<8x32xi32>
    %cst_5 = arith.constant 3.000000e-01 : f32
    %15 = vector.broadcast %cst_5 : f32 to vector<8x32xf32>
    %16 = arith.subf %5, %15 : vector<8x32xf32>
    %cst_6 = arith.constant 3.000000e+01 : f32
    %17 = vector.broadcast %cst_6 : f32 to vector<8x32xf32>
    %18 = arith.mulf %17, %16 : vector<8x32xf32>
    %cst_7 = arith.constant 3.000000e+01 : f32
    %19 = vector.broadcast %cst_7 : f32 to vector<8x32xf32>
    %20 = arith.mulf %19, %5 : vector<8x32xf32>
    %21 = arith.select %12, %18, %20 : vector<8x32xi1>, vector<8x32xf32>
    %cst_8 = arith.constant -1.000000e+30 : f32
    %22 = vector.broadcast %cst_8 : f32 to vector<8x32xf32>
    %23 = arith.select %14, %21, %22 : vector<8x32xi1>, vector<8x32xf32>
    %c0_9 = arith.constant 0 : index
    %c0_10 = arith.constant 0 : index
    %24 = vector.load %arg5[%c0_9, %c0_10] : memref<8x1xf32, #tpu.memory_space<vmem>>, vector<8x1xf32>
    %cst_11 = arith.constant dense<0xFF800000> : vector<8xf32>
    %25 = vector.multi_reduction <maximumf>, %23, %cst_11 [1] : vector<8x32xf32> to vector<8xf32>
    %26 = vector.shape_cast %25 : vector<8xf32> to vector<8x1xf32>
    %27 = arith.maximumf %24, %26 : vector<8x1xf32>
    %28 = arith.subf %24, %27 : vector<8x1xf32>
    %29 = math.exp %28 : vector<8x1xf32>
    %30 = vector.broadcast %27 : vector<8x1xf32> to vector<8x32xf32>
    %31 = arith.subf %23, %30 : vector<8x32xf32>
    %32 = math.exp %31 : vector<8x32xf32>
    %c0_12 = arith.constant 0 : index
    %c0_13 = arith.constant 0 : index
    %33 = vector.load %arg6[%c0_12, %c0_13] : memref<8x1xf32, #tpu.memory_space<vmem>>, vector<8x1xf32>
    %34 = arith.mulf %29, %33 : vector<8x1xf32>
    %cst_14 = arith.constant dense<0.000000e+00> : vector<8xf32>
    %35 = vector.multi_reduction <add>, %32, %cst_14 [1] : vector<8x32xf32> to vector<8xf32>
    %36 = vector.shape_cast %35 : vector<8xf32> to vector<8x1xf32>
    %37 = arith.addf %34, %36 : vector<8x1xf32>
    %c0_15 = arith.constant 0 : index
    %c0_16 = arith.constant 0 : index
    %38 = vector.load %arg6[%c0_15, %c0_16] : memref<8x1xf32, #tpu.memory_space<vmem>>, vector<8x1xf32>
    tpu.vector_store %arg6[%c0_15, %c0_16], %37 {strides = array<i32>} : memref<8x1xf32, #tpu.memory_space<vmem>>, vector<8x1xf32>,
    %c0_17 = arith.constant 0 : index
    %c0_18 = arith.constant 0 : index
    %39 = vector.load %arg5[%c0_17, %c0_18] : memref<8x1xf32, #tpu.memory_space<vmem>>, vector<8x1xf32>
    tpu.vector_store %arg5[%c0_17, %c0_18], %27 {strides = array<i32>} : memref<8x1xf32, #tpu.memory_space<vmem>>, vector<8x1xf32>,
    %c0_19 = arith.constant 0 : index
    %c0_20 = arith.constant 0 : index
    %40 = vector.load %arg7[%c0_19, %c0_20] : memref<8x1xf32, #tpu.memory_space<vmem>>, vector<8x1xf32>
    %cst_21 = arith.constant 0.000000e+00 : f32
    %41 = vector.broadcast %cst_21 : f32 to vector<8x32xf32>
    %42 = arith.select %12, %23, %41 : vector<8x32xi1>, vector<8x32xf32>
    %cst_22 = arith.constant dense<0.000000e+00> : vector<8xf32>
    %43 = vector.multi_reduction <add>, %42, %cst_22 [1] : vector<8x32xf32> to vector<8xf32>
    %44 = vector.shape_cast %43 : vector<8xf32> to vector<8x1xf32>
    %45 = arith.addf %40, %44 : vector<8x1xf32>
    %c0_23 = arith.constant 0 : index
    %c0_24 = arith.constant 0 : index
    %46 = vector.load %arg7[%c0_23, %c0_24] : memref<8x1xf32, #tpu.memory_space<vmem>>, vector<8x1xf32>
    tpu.vector_store %arg7[%c0_23, %c0_24], %45 {strides = array<i32>} : memref<8x1xf32, #tpu.memory_space<vmem>>, vector<8x1xf32>,
    %c0_i32_25 = arith.constant 0 : i32
    %47 = arith.cmpi eq, %arg1, %c0_i32_25 : i32
    %48 = arith.extui %47 : i1 to i32
    %c0_i32_26 = arith.constant 0 : i32
    %49 = arith.cmpi ne, %48, %c0_i32_26 : i32
    scf.if %49 {
      %c0_27 = arith.constant 0 : index
      %c0_28 = arith.constant 0 : index
      %50 = vector.load %arg5[%c0_27, %c0_28] : memref<8x1xf32, #tpu.memory_space<vmem>>, vector<8x1xf32>
      %c0_29 = arith.constant 0 : index
      %c0_30 = arith.constant 0 : index
      %51 = vector.load %arg6[%c0_29, %c0_30] : memref<8x1xf32, #tpu.memory_space<vmem>>, vector<8x1xf32>
      %52 = math.log %51 : vector<8x1xf32>
      %53 = arith.addf %50, %52 : vector<8x1xf32>
      %c0_31 = arith.constant 0 : index
      %c0_32 = arith.constant 0 : index
      %54 = vector.load %arg7[%c0_31, %c0_32] : memref<8x1xf32, #tpu.memory_space<vmem>>, vector<8x1xf32>
      %55 = arith.subf %53, %54 : vector<8x1xf32>
      %c0_33 = arith.constant 0 : index
      %c0_34 = arith.constant 0 : index
      %56 = vector.load %arg4[%c0_33, %c0_34] : memref<8x1xf32, #tpu.memory_space<vmem>>, vector<8x1xf32>
      tpu.vector_store %arg4[%c0_33, %c0_34], %55 {strides = array<i32>} : memref<8x1xf32, #tpu.memory_space<vmem>>, vector<8x1xf32>,
    } else {
    }
    return
  }
  func.func @transform_0(%arg0: i32, %arg1: i32) -> (i32, i32) {
    %c0_i32 = arith.constant 0 : i32
    return %arg0, %arg1 : i32, i32
  }
  func.func @transform_1(%arg0: i32, %arg1: i32) -> (i32, i32) {
    %c0_i32 = arith.constant 0 : i32
    %c0_i32_0 = arith.constant 0 : i32
    return %arg0, %c0_i32 : i32, i32
  }
  func.func @transform_2(%arg0: i32, %arg1: i32) -> (i32, i32) {
    %c0_i32 = arith.constant 0 : i32
    %c0_i32_0 = arith.constant 0 : i32
    return %arg0, %c0_i32 : i32, i32
  }
}

</mosaic_0001>

<llo_original>
// kernel: tpu_custom_call.1
$region0: #{tpu_custom_call.1}
  #allocation0 [shape = 'u32[]', space=smem, size = 0x4, offset = 0x4, fixed_abs, tag = 'smem constant byte address 0x4 - core index']
  #allocation1 [shape = 'u32[72,128]{1,0:T(1,128)}', space=vmem, size = 0x9000, scoped, tag = 'internal scratch']
  #allocation2 [shape = 'f32[8,1]{1,0:T(8,128)}', space=vmem, size = 0x1000, scoped, tag = 'scratch operand']
  #allocation3 [shape = 'f32[8,1]{1,0:T(8,128)}', space=vmem, size = 0x1000, scoped, tag = 'scratch operand']
  #allocation4 [shape = 'f32[8,1]{1,0:T(8,128)}', space=vmem, size = 0x1000, scoped, tag = 'scratch operand']
  %s0 = inlined_call_operand.vmem [shape: f32[8,32], index: 0, kind: input, shape index: {}]
  %s1 = inlined_call_operand.vmem [shape: s32[8,1], index: 1, kind: input, shape index: {}]
  %s2 = inlined_call_operand.vmem [shape: f32[8,1], index: 2, kind: output, shape index: {}]
  %s3 = sld [smem:[#allocation0]]
  $region26: #{tpu_custom_call.1} parent=0
    _
  %s5 = ssub.s32 1, %s3
  %s6 = scalar_select 0, %s5, %s3
  // Predicated region
  $region2: #{tpu_custom_call.1} parent=0 // pred_check
    _
  $region3: #{tpu_custom_call.1} parent=0 // pred_check_branch
    %8 = sbr.rel (0) target = $region5
  $region4: #{tpu_custom_call.1} parent=0 // pred_region
    _
  $region5: #{tpu_custom_call.1} parent=0 // pred_fallthru
    _
  // Predicated region
  $region6: #{tpu_custom_call.1} parent=0 // pred_check
    _
  $region7: #{tpu_custom_call.1} parent=0 // pred_check_branch
    %10 = sbr.rel (0) target = $region9
  $region8: #{tpu_custom_call.1} parent=0 // pred_region
    _
  $region9: #{tpu_custom_call.1} parent=0 // pred_fallthru
    _
  %p11 = scmp.eq.s32.totalorder 0, 0
  // Predicated region
  $region10: #{tpu_custom_call.1} parent=0 // pred_check
    %p12 = pneg %p11
  $region11: #{tpu_custom_call.1} parent=0 // pred_check_branch
    %14 = sbr.rel (%p12) target = $region13
  $region12: #{tpu_custom_call.1} parent=0 // pred_region
    %vm15 = vcmask 7168
    %16 = vst.msk [vmem:[#allocation2] sm:$0xff] %vm15, -1e+30
    %17 = vst.msk [vmem:[#allocation3] sm:$0xff] %vm15, 0.0
    %18 = vst.msk [vmem:[#allocation4] sm:$0xff] %vm15, 0.0
  $region13: #{tpu_custom_call.1} parent=0 // pred_fallthru
    _
  %v19 = vld [vmem:[%s0] sm:$0xff]
  %v20 = vmax.f32 %v19, 0.0
  %v21 = vld [vmem:[%s1] sm:$0xff]
  %s22 = smul.u32 0, 32
  %v23 = vlaneseq
  %v24 = vand.u32 %v23, 127
  %v25 = vstv %s22
  %v26 = vadd.s32 %v25, %v24
  %27 = vset.pattern.permute.xlu0 0
  %28 = vperm.xlu0 %27, %v21
  %v29 = vpop.permute.xlu0 %28
  %vm30 = vcmp.eq.s32.totalorder %v26, %v29
  %vm31 = vcmp.lt.s32.totalorder %v26, 32
  %v32 = vsub.f32 %v20, 0.3
  %v33 = vmul.f32 %v32, 30.0
  %v34 = vmul.f32 %v20, 30.0
  %v35 = vsel %vm30, %v33, %v34
  %v36 = vsel %vm31, %v35, -1e+30
  %v37 = vld [vmem:[#allocation2] sm:$0xff]
  %vm38 = vcmask 261120
  %v39 = vsel %vm38, %v36, -inf
  %40 = vmax.xlane.f32.xlu0 %v39
  %v41 = vpop.xlane.xlu0 %40
  %v42 = vmax.f32 %v37, %v41
  %v43 = vsub.f32 %v37, %v42
  %v44 = vmul.f32 %v43, 1.442695
  %v45 = vpow.pop %v44
  %47 = vset.pattern.permute.xlu0 0
  %48 = vperm.xlu0 %47, %v42
  %v49 = vpop.permute.xlu0 %48
  %v51 = vsub.f32 %v36, %v49
  %v52 = vmul.f32 %v51, 1.442695
  %v53 = vpow.pop %v52
  %v54 = vld [vmem:[#allocation3] sm:$0xff]
  %v55 = vmul.f32 %v45, %v54
  %v56 = vsel %vm38, %v53, 0.0
  %57 = vadd.xlane.f32.xlu0 %v56
  %v58 = vpop.xlane.xlu0 %57
  %v59 = vadd.f32 %v55, %v58
  %vm60 = vcmask 7168
  %61 = vst.msk [vmem:[#allocation3] sm:$0xff] %vm60, %v59
  %62 = vst.msk [vmem:[#allocation2] sm:$0xff] %vm60, %v42
  %v63 = vld [vmem:[#allocation4] sm:$0xff]
  %v64 = vsel %vm30, %v36, 0.0
  %v65 = vsel %vm38, %v64, 0.0
  %66 = vadd.xlane.f32.xlu0 %v65
  %v67 = vpop.xlane.xlu0 %66
  %v68 = vadd.f32 %v63, %v67
  %69 = vst.msk [vmem:[#allocation4] sm:$0xff] %vm60, %v68
  // Predicated region
  $region14: #{tpu_custom_call.1} parent=0 // pred_check
    %p70 = pneg %p11
  $region15: #{tpu_custom_call.1} parent=0 // pred_check_branch
    %72 = sbr.rel (%p70) target = $region17
  $region16: #{tpu_custom_call.1} parent=0 // pred_region
    %v73 = vld [vmem:[#allocation2] sm:$0xff]
    %v74 = vld [vmem:[#allocation3] sm:$0xff]
    %v75 = vlog2.pop %v74
    %v76 = vmul.f32 %v75, 0.6931472
    %v77 = vadd.f32 %v73, %v76
    %v78 = vld [vmem:[#allocation4] sm:$0xff]
    %v79 = vsub.f32 %v77, %v78
    %80 = vst.msk [vmem:[%s2] sm:$0xff] %vm60, %v79
  $region17: #{tpu_custom_call.1} parent=0 // pred_fallthru
    _
  // Predicated region
  $region18: #{tpu_custom_call.1} parent=0 // pred_check
    _
  $region19: #{tpu_custom_call.1} parent=0 // pred_check_branch
    %82 = sbr.rel (0) target = $region21
  $region20: #{tpu_custom_call.1} parent=0 // pred_region
    _
  $region21: #{tpu_custom_call.1} parent=0 // pred_fallthru
    _
  // Predicated region
  $region22: #{tpu_custom_call.1} parent=0 // pred_check
    _
  $region23: #{tpu_custom_call.1} parent=0 // pred_check_branch
    %84 = sbr.rel (0) target = $region25
  $region24: #{tpu_custom_call.1} parent=0 // pred_region
    _
  $region25: #{tpu_custom_call.1} parent=0 // pred_fallthru
    _

</llo_original>
